<compile_context>
chip_gen: v6e
topology: v6e:2x2x1
jax: 0.10.0
libtpu: 0.0.40
codegen_flags: <defaults>
</compile_context>

<pallas_src>
import functools
import math

import jax
import jax.numpy as jnp
from jax import lax
from jax.experimental import pallas as pl
from jax.experimental.pallas import tpu as pltpu

_LANE = 128
_SUBLANE = 8
# Double-buffered table must stay under this to use the VMEM one-hot path.
_VMEM_TABLE_BUDGET_BYTES = 4 * 1024 * 1024
# Max tokens whose ids are scalar-prefetched into SMEM per pallas_call (gather path).
_MAX_GATHER_TOKENS_PER_CALL = 8192
_GATHER_LOOKAHEAD = 8  # row DMAs kept in flight


def _round_up(x: int, m: int) -> int:
    return (x + m - 1) // m * m


# --------------------------------------------------------------------------
# Path A: small vocab -- one-hot MXU matmul against the VMEM-resident table.
# --------------------------------------------------------------------------
def _onehot_embed_kernel(ids_ref, table_ref, out_ref, *, scale: float):
    # ids_ref  : VMEM (tokens, 1) int32
    # table_ref: VMEM (vocab, d_model_padded) -- same block every step, DMA'd once
    # out_ref  : VMEM (tokens, d_model_padded), lane-dense
    tokens = out_ref.shape[0]
    vocab = table_ref.shape[0]
    ids = ids_ref[...]                                               # (tokens, 1)
    onehot = (lax.broadcasted_iota(jnp.int32, (tokens, vocab), 1) == ids
              ).astype(table_ref.dtype)                              # (tokens, vocab)
    rows = jnp.dot(onehot, table_ref[...],
                   preferred_element_type=jnp.float32)               # MXU gather
    out_ref[...] = (rows * scale).astype(out_ref.dtype)              # f32 scale on VPU


def _onehot_path(ids_2d, table, *, tokens_per_block, scale, out_dtype):
    padded = ids_2d.shape[0]
    vocab, dmp = table.shape
    kernel = functools.partial(_onehot_embed_kernel, scale=scale)
    return pl.pallas_call(
        kernel,
        out_shape=jax.ShapeDtypeStruct((padded, dmp), out_dtype),
        grid_spec=pltpu.PrefetchScalarGridSpec(
            num_scalar_prefetch=0,
            grid=(padded // tokens_per_block,),
            in_specs=[
                pl.BlockSpec((tokens_per_block, 1), lambda i: (i, 0)),
                # Whole table, same block index every step: fetched once,
                # then kept resident for the rest of the grid.
                pl.BlockSpec((vocab, dmp), lambda i: (0, 0)),
            ],
            out_specs=pl.BlockSpec((tokens_per_block, dmp), lambda i: (i, 0)),
        ),
        compiler_params=pltpu.CompilerParams(
            dimension_semantics=("parallel",),       # independent token blocks
            vmem_limit_bytes=32 * 1024 * 1024,
        ),
    )(ids_2d, table)


# --------------------------------------------------------------------------
# Path B: large vocab -- table stays in HBM, overlapped per-row DMA gather.
# --------------------------------------------------------------------------
def _gather_embed_kernel(ids_ref, table_hbm, out_ref, slab_ref, sems, *,
                         tokens_per_block: int, scale: float):
    # ids_ref  : SMEM (num_tokens,) int32 (scalar prefetch, bounded by chunking)
    # table_hbm: HBM  (vocab, d_model_padded)  -- memory_space=pl.ANY
    # out_ref  : VMEM (tokens_per_block, d_model_padded)
    # slab_ref : VMEM scratch slab, same shape as out_ref
    # sems     : DMA semaphores, (_GATHER_LOOKAHEAD,)
    base = pl.program_id(0) * tokens_per_block
    nbuf = _GATHER_LOOKAHEAD

    def start_row(t):
        idx = ids_ref[base + t]
        pltpu.make_async_copy(table_hbm.at[pl.ds(idx, 1), :],
                              slab_ref.at[pl.ds(t, 1), :],
                              sems.at[t % nbuf]).start()

    def wait_row(t):
        # Only the destination ref + semaphore matter for the wait.
        pltpu.make_async_copy(table_hbm.at[pl.ds(0, 1), :],
                              slab_ref.at[pl.ds(t, 1), :],
                              sems.at[t % nbuf]).wait()

    # Prime the lookahead window, then keep `nbuf` row DMAs in flight.
    for t in range(nbuf):
        start_row(t)

    def body(t, carry):
        wait_row(t)

        @pl.when(t + nbuf < tokens_per_block)
        def _():
            start_row(t + nbuf)

        return carry

    lax.fori_loop(0, tokens_per_block, body, 0)

    # Single full-width, lane-dense scale + store of the whole tile.
    out_ref[...] = (slab_ref[...].astype(jnp.float32) * scale).astype(out_ref.dtype)


def _gather_path(ids_flat, table, *, tokens_per_block, scale, out_dtype):
    padded = ids_flat.shape[0]
    dmp = table.shape[1]
    kernel = functools.partial(_gather_embed_kernel,
                               tokens_per_block=tokens_per_block, scale=scale)
    return pl.pallas_call(
        kernel,
        out_shape=jax.ShapeDtypeStruct((padded, dmp), out_dtype),
        grid_spec=pltpu.PrefetchScalarGridSpec(
            num_scalar_prefetch=1,                         # ids -> SMEM
            grid=(padded // tokens_per_block,),
            in_specs=[pl.BlockSpec(memory_space=pl.ANY)],  # table stays in HBM
            out_specs=pl.BlockSpec((tokens_per_block, dmp), lambda i, ids: (i, 0)),
            scratch_shapes=[
                pltpu.VMEM((tokens_per_block, dmp), table.dtype),
                pltpu.SemaphoreType.DMA((_GATHER_LOOKAHEAD,)),
            ],
        ),
        compiler_params=pltpu.CompilerParams(
            dimension_semantics=("parallel",),
            vmem_limit_bytes=32 * 1024 * 1024,
        ),
    )(ids_flat, table)


# --------------------------------------------------------------------------
# Public wrapper (== InputEmbeddings.forward)
# --------------------------------------------------------------------------
def input_embeddings(ids: jax.Array, emb_table: jax.Array, *,
                     tokens_per_block: int = 256,
                     force_gather: bool = False) -> jax.Array:
    """emb_table[ids] * sqrt(d_model).

    ids       : (B, S) integer token indices in [0, vocab)
    emb_table : (vocab, d_model) embedding weights (nn.Embedding.weight)
    returns   : (B, S, d_model) in emb_table.dtype
    """
    B, S = ids.shape
    vocab, d_model = emb_table.shape
    scale = math.sqrt(d_model)          # the module scales by sqrt(dModel)
    num_tokens = B * S

    # Lane-dense output: pad the feature dim to a multiple of 128 if needed.
    dmp = _round_up(d_model, _LANE)
    table = emb_table
    if dmp != d_model:
        table = jnp.pad(emb_table, ((0, 0), (0, dmp - d_model)))

    # Big token tiles to amortize per-step pipeline overhead; never larger
    # than the (sublane-rounded) token count.
    tpb = max(_SUBLANE, _round_up(min(tokens_per_block, num_tokens), _SUBLANE))
    padded = _round_up(num_tokens, tpb)

    ids_flat = ids.reshape(-1).astype(jnp.int32)
    if padded != num_tokens:
        ids_flat = jnp.pad(ids_flat, (0, padded - num_tokens))   # pad ids -> row 0

    table_bytes_2buf = 2 * vocab * dmp * table.dtype.itemsize
    use_gather = force_gather or table_bytes_2buf > _VMEM_TABLE_BUDGET_BYTES

    if not use_gather:
        out_padded = _onehot_path(ids_flat.reshape(padded, 1), table,
                                  tokens_per_block=tpb, scale=scale,
                                  out_dtype=table.dtype)
    else:
        # Chunk calls so the scalar-prefetched ids stay small in SMEM for any B*S.
        chunk = _round_up(min(_MAX_GATHER_TOKENS_PER_CALL, padded), tpb)
        parts = []
        for start in range(0, padded, chunk):
            n = min(chunk, padded - start)
            parts.append(_gather_path(ids_flat[start:start + n], table,
                                      tokens_per_block=tpb, scale=scale,
                                      out_dtype=table.dtype))
        out_padded = parts[0] if len(parts) == 1 else jnp.concatenate(parts, axis=0)

    out = out_padded
    if padded != num_tokens:
        out = out[:num_tokens]
    if dmp != d_model:
        out = out[:, :d_model]
    return out.reshape(B, S, d_model)


if __name__ == "__main__":
    # Small deterministic example consistent with the module's forward:
    # dModel = 128, vocabSize = 64, batch = 2, seq = 8.
    d_model = 128
    vocab_size = 64
    batch, seq = 2, 8

    key = jax.random.PRNGKey(0)
    k_ids, k_w = jax.random.split(key)
    ids = jax.random.randint(k_ids, (batch, seq), 0, vocab_size, dtype=jnp.int32)
    emb_table = jax.random.normal(k_w, (vocab_size, d_model), dtype=jnp.float32)

    # Pure-JAX reference: embedding lookup * sqrt(dModel).
    ref = jnp.take(emb_table, ids, axis=0) * math.sqrt(d_model)

    # Path A (default for this small vocab): one-hot MXU matmul.
    out_a = jax.block_until_ready(input_embeddings(ids, emb_table))
    assert out_a.shape == (batch, seq, d_model)
    assert out_a.dtype == jnp.float32
    # MXU-path tolerance (one non-zero product per output element).
    assert jnp.allclose(out_a, ref, rtol=5e-3, atol=1e-3)

    # Path B (used automatically for large vocab / v7x): HBM DMA row gather.
    out_b = jax.block_until_ready(input_embeddings(ids, emb_table, force_gather=True))
    assert out_b.shape == (batch, seq, d_model)
    assert jnp.allclose(out_b, ref, rtol=1e-6, atol=1e-6)

    print("KERNEL_OK")
</pallas_src>

<mosaic_0001>
module attributes {stable_mosaic.version = 11 : i64} {
  func.func @_onehot_embed_kernel(%arg0: i32, %arg1: memref<16x1xi32, #tpu.memory_space<vmem>>, %arg2: memref<64x128xf32, #tpu.memory_space<vmem>>, %arg3: memref<16x128xf32, #tpu.memory_space<vmem>>) attributes {dimension_semantics = [#tpu.dimension_semantics<parallel>], iteration_bounds = array<i64: 1>, scalar_prefetch = 0 : i64, scratch_operands = 0 : i64, tpu.core_type = #tpu.core_type<tc>, window_params = [{transform_indices = @transform_0, window_bounds = array<i64: 16, 1>}, {pipeline_mode = #tpu.pipeline_mode<synchronous>, transform_indices = @transform_1, window_bounds = array<i64: 64, 128>}, {transform_indices = @transform_2, window_bounds = array<i64: 16, 128>}]} {
    %c0 = arith.constant 0 : index
    %c0_0 = arith.constant 0 : index
    %0 = vector.load %arg1[%c0, %c0_0] : memref<16x1xi32, #tpu.memory_space<vmem>>, vector<16x1xi32>
    %1 = tpu.iota {dimensions = array<i32: 1>} : vector<16x64xi32>
    %2 = vector.broadcast %0 : vector<16x1xi32> to vector<16x64xi32>
    %3 = arith.cmpi eq, %1, %2 : vector<16x64xi32>
    %4 = arith.extui %3 : vector<16x64xi1> to vector<16x64xi32>
    %5 = arith.sitofp %4 : vector<16x64xi32> to vector<16x64xf32>
    %c0_1 = arith.constant 0 : index
    %c0_2 = arith.constant 0 : index
    %6 = vector.load %arg2[%c0_1, %c0_2] : memref<64x128xf32, #tpu.memory_space<vmem>>, vector<64x128xf32>
    %cst = arith.constant dense<0.000000e+00> : vector<16x128xf32>
    %7 = tpu.matmul %5, %6, %cst {dimension_numbers = #tpu.dot_dimension_numbers<[1], [0], [0], [1], [0, 0, 1, 1], [], []>} : vector<16x64xf32>, vector<64x128xf32>, vector<16x128xf32> -> vector<16x128xf32>
    %cst_3 = arith.constant 11.3137083 : f32
    %8 = vector.broadcast %cst_3 : f32 to vector<16x128xf32>
    %9 = arith.mulf %7, %8 : vector<16x128xf32>
    %c0_4 = arith.constant 0 : index
    %c0_5 = arith.constant 0 : index
    %10 = vector.load %arg3[%c0_4, %c0_5] : memref<16x128xf32, #tpu.memory_space<vmem>>, vector<16x128xf32>
    tpu.vector_store %arg3[%c0_4, %c0_5], %9 {strides = array<i32>} : memref<16x128xf32, #tpu.memory_space<vmem>>, vector<16x128xf32>,
    return
  }
  func.func @transform_0(%arg0: i32) -> (i32, i32) {
    %c0_i32 = arith.constant 0 : i32
    %c0_i32_0 = arith.constant 0 : i32
    return %arg0, %c0_i32 : i32, i32
  }
  func.func @transform_1(%arg0: i32) -> (i32, i32) {
    %c0_i32 = arith.constant 0 : i32
    %c0_i32_0 = arith.constant 0 : i32
    %c0_i32_1 = arith.constant 0 : i32
    return %c0_i32, %c0_i32_0 : i32, i32
  }
  func.func @transform_2(%arg0: i32) -> (i32, i32) {
    %c0_i32 = arith.constant 0 : i32
    %c0_i32_0 = arith.constant 0 : i32
    return %arg0, %c0_i32 : i32, i32
  }
}

</mosaic_0001>

<llo_original>
// kernel: tpu_custom_call.1
$region0: #{tpu_custom_call.1}
  #allocation0 [shape = 'u32[]', space=smem, size = 0x4, offset = 0x4, fixed_abs, tag = 'smem constant byte address 0x4 - core index']
  #allocation1 [shape = 'u32[144,128]{1,0:T(1,128)}', space=vmem, size = 0x12000, scoped, tag = 'internal scratch']
  %s0 = inlined_call_operand.vmem [shape: s32[16,1], index: 0, kind: input, shape index: {}]
  %s1 = inlined_call_operand.hbm [shape: f32[64,128], index: 1, kind: input, shape index: {}]
  %s2 = inlined_call_operand.hbm [shape: f32[16,128], index: 2, kind: output, shape index: {}]
  %s3 = sld [smem:[#allocation0]]
  $region22: #{tpu_custom_call.1} parent=0
    _
  %s5 = ssub.s32 1, %s3
  %s6 = scalar_select 0, %s5, %s3
  $region1: #{tpu_custom_call.1} parent=0
    #allocation2 [shape = 'u8[32768]{0}', space=vmem, size = 0x8000, scoped, tag = 'input window, operand 1, single buffered']
    #allocation3 [shape = 's32[1]{0}', space=sflag, size = 0x4, scoped, tag = 'scoped memory for tpu_custom_call.1']
    #allocation4 [shape = 's32[1]{0}', space=sflag, size = 0x4, scoped, tag = 'scoped memory for tpu_custom_call.1']
    #allocation5 [shape = 'u8[8192]{0}', space=vmem, size = 0x2000, scoped, tag = 'output window, operand 0, single buffered']
    %7 = vsyncpa [#allocation3], 0
    %8 = vsyncpa [#allocation4], 0
    // Predicated region
    $region2: #{tpu_custom_call.1} parent=1 // pred_check
      _
    $region3: #{tpu_custom_call.1} parent=1 // pred_check_branch
      %10 = sbr.rel (0) target = $region5
    $region4: #{tpu_custom_call.1} parent=1 // pred_region
      _
    $region5: #{tpu_custom_call.1} parent=1 // pred_fallthru
      _
    // Predicated region
    $region6: #{tpu_custom_call.1} parent=1 // pred_check
      _
    $region7: #{tpu_custom_call.1} parent=1 // pred_check_branch
      %12 = sbr.rel (0) target = $region9
    $region8: #{tpu_custom_call.1} parent=1 // pred_region
      %s14 = ssub.s32 1024, 1024
      %15 = vsyncadd [#allocation3], %s14
      %s16 = sshll.u32 [#allocation2], 4
      %s17 = int_to_ptr.vmem [resolvable:$true] %s16
      %22 = dma.hbm_to_vmem [thread:$0]  %s1, 1024, %s17, [#allocation3], 128, 128, 8
    $region9: #{tpu_custom_call.1} parent=1 // pred_fallthru
      _
    // Predicated region
    $region10: #{tpu_custom_call.1} parent=1 // pred_check
      _
    $region11: #{tpu_custom_call.1} parent=1 // pred_check_branch
      %24 = sbr.rel (0) target = $region13
    $region12: #{tpu_custom_call.1} parent=1 // pred_region
      %25 = dma.done [#allocation3], 1024
    $region13: #{tpu_custom_call.1} parent=1 // pred_fallthru
      _
    %v26 = vld [vmem:[%s0] sm:$0xff]
    %v27 = vld [vmem:[%s0 + $0x8] sm:$0xff]
    %v28 = vlaneseq
    %v29 = vand.u32 %v28, 127
    %30 = vset.pattern.permute.xlu0 0
    %31 = vperm.xlu0 %30, %v26
    %v32 = vpop.permute.xlu0 %31
    %33 = vset.pattern.permute.xlu0 0
    %34 = vperm.xlu0 %33, %v27
    %v35 = vpop.permute.xlu0 %34
    %vm36 = vcmp.eq.s32.totalorder %v29, %v32
    %vm37 = vcmp.eq.s32.totalorder %v29, %v35
    %v38 = vsel %vm36, 1, 0
    %v39 = vsel %vm37, 1, 0
    %v40 = vcvt.s32.f32 %v38
    %v41 = vcvt.s32.f32 %v39
    %v42 = vld [vmem:[#allocation2] sm:$0xff]
    %v43 = vld [vmem:[#allocation2 + $0x8] sm:$0xff]
    %v44 = vld [vmem:[#allocation2 + $0x10] sm:$0xff]
    %v45 = vld [vmem:[#allocation2 + $0x18] sm:$0xff]
    %v46 = vld [vmem:[#allocation2 + $0x20] sm:$0xff]
    %v47 = vld [vmem:[#allocation2 + $0x28] sm:$0xff]
    %v48 = vld [vmem:[#allocation2 + $0x30] sm:$0xff]
    %v49 = vld [vmem:[#allocation2 + $0x38] sm:$0xff]
    %vm50 = vcmask 523264
    %v52 = vsel %vm50, %v40, 0
    %v55 = vsel %vm50, %v41, 0
    %57 = vmatprep.subr.mxu0 0.0
    %58 = vmatpush1.msra.mxu0 0.0
    %59 = vmatprep.subr.mxu0 0.0
    %60 = vmatpush1.msra.mxu0 0.0
    %61 = vmatprep.subr.mxu0 0.0
    %62 = vmatpush1.msra.mxu0 0.0
    %63 = vmatprep.subr.mxu0 0.0
    %64 = vmatpush1.msra.mxu0 0.0
    %65 = vmatprep.subr.mxu0 0.0
    %66 = vmatpush1.msra.mxu0 0.0
    %67 = vmatprep.subr.mxu0 0.0
    %68 = vmatpush1.msra.mxu0 0.0
    %69 = vmatprep.subr.mxu0 0.0
    %70 = vmatpush1.msra.mxu0 0.0
    %71 = vmatprep.subr.mxu0 0.0
    %72 = vmatpush1.msra.mxu0 0.0
    %73 = vmatprep.subr.mxu0 0.0
    %74 = vmatpush1.msra.mxu0 %v49
    %75 = vmatprep.subr.mxu0 0.0
    %76 = vmatpush1.msra.mxu0 %v48
    %77 = vmatprep.subr.mxu0 0.0
    %78 = vmatpush1.msra.mxu0 %v47
    %79 = vmatprep.subr.mxu0 0.0
    %80 = vmatpush1.msra.mxu0 %v46
    %81 = vmatprep.subr.mxu0 0.0
    %82 = vmatpush1.msra.mxu0 %v45
    %83 = vmatprep.subr.mxu0 0.0
    %84 = vmatpush1.msra.mxu0 %v44
    %85 = vmatprep.subr.mxu0 0.0
    %86 = vmatpush1.msra.mxu0 %v43
    %87 = vmatprep.subr.mxu0 0.0
    %88 = vmatpush1.msra.mxu0 %v42
    %89 = vmatprep.subr.mxu0 0.0
    %90 = vmatpush2.msra.mxu0 0.0
    %91 = vmatprep.subr.mxu0 0.0
    %92 = vmatpush2.msra.mxu0 0.0
    %93 = vmatprep.subr.mxu0 0.0
    %94 = vmatpush2.msra.mxu0 0.0
    %95 = vmatprep.subr.mxu0 0.0
    %96 = vmatpush2.msra.mxu0 0.0
    %97 = vmatprep.subr.mxu0 0.0
    %98 = vmatpush2.msra.mxu0 0.0
    %99 = vmatprep.subr.mxu0 0.0
    %100 = vmatpush2.msra.mxu0 0.0
    %101 = vmatprep.subr.mxu0 0.0
    %102 = vmatpush2.msra.mxu0 0.0
    %103 = vmatprep.subr.mxu0 0.0
    %104 = vmatpush2.msra.mxu0 0.0
    %105 = vmatprep.subr.mxu0 0.0
    %106 = vmatpush2.msra.mxu0 0.0
    %107 = vmatprep.subr.mxu0 0.0
    %108 = vmatpush2.msra.mxu0 0.0
    %109 = vmatprep.subr.mxu0 0.0
    %110 = vmatpush2.msra.mxu0 0.0
    %111 = vmatprep.subr.mxu0 0.0
    %112 = vmatpush2.msra.mxu0 0.0
    %113 = vmatprep.subr.mxu0 0.0
    %114 = vmatpush2.msra.mxu0 0.0
    %115 = vmatprep.subr.mxu0 0.0
    %116 = vmatpush2.msra.mxu0 0.0
    %117 = vmatprep.subr.mxu0 0.0
    %118 = vmatpush2.msra.mxu0 0.0
    %119 = vmatprep.subr.mxu0 0.0
    %120 = vmatpush2.msra.mxu0 0.0
    %121 = vmatprep.mubr.f32.mxu0 0.0
    %122 = vmatmul.mubr.f32.gmra.mxu0 %v52
    %v123 = vpop.f32.mrf.mxu0
    %v124 = vadd.f32 0.0, %v123
    %v125 = vpop.f32.mrf.mxu0
    %126 = vmatprep.mubr.f32.mxu0 0.0
    %127 = vmatmul.mubr.f32.gmra.mxu0 %v55
    %v128 = vpop.f32.mrf.mxu0
    %v129 = vadd.f32 0.0, %v128
    %v130 = vpop.f32.mrf.mxu0
    %131 = vdwg.mxu0
    %v132 = vmul.f32 %v124, 11.313708
    %v133 = vmul.f32 %v129, 11.313708
    %134 = vst [vmem:[#allocation5] sm:$0xff] %v132
    %135 = vst [vmem:[#allocation5 + $0x8] sm:$0xff] %v133
    // Predicated region
    $region14: #{tpu_custom_call.1} parent=1 // pred_check
      _
    $region15: #{tpu_custom_call.1} parent=1 // pred_check_branch
      %137 = sbr.rel (0) target = $region17
    $region16: #{tpu_custom_call.1} parent=1 // pred_region
      %s139 = ssub.s32 256, 256
      %140 = vsyncadd [#allocation4], %s139
      %s141 = sshll.u32 [#allocation5], 4
      %s142 = int_to_ptr.vmem [resolvable:$true] %s141
      %147 = dma.vmem_to_hbm [thread:$0]  %s142, 256, %s2, [#allocation4], 128, 128, 8
    $region17: #{tpu_custom_call.1} parent=1 // pred_fallthru
      _
    // Predicated region
    $region18: #{tpu_custom_call.1} parent=1 // pred_check
      _
    $region19: #{tpu_custom_call.1} parent=1 // pred_check_branch
      %149 = sbr.rel (0) target = $region21
    $region20: #{tpu_custom_call.1} parent=1 // pred_region
      %150 = dma.done [#allocation4], 256
    $region21: #{tpu_custom_call.1} parent=1 // pred_fallthru
      _
    %151 = vsyncpa [#allocation3], 1
    %152 = vsyncpa [#allocation4], 1

</llo_original>
